<compile_context>
chip_gen: v5e
topology: v5e:2x2
jax: 0.10.0
libtpu: 0.0.40
codegen_flags: <defaults>
</compile_context>

<pallas_src>
import functools

import jax
import jax.numpy as jnp
import numpy as np
from jax import lax
from jax.experimental import pallas as pl
from jax.experimental.pallas import tpu as pltpu


def _round_up(x, m):
    return ((x + m - 1) // m) * m


def _pool_kernel(x_ref, avg_ref, max_ref, sum_acc, max_acc, *,
                 hw, hw_tile, inv_hw, need_mask):
    k = pl.program_id(1)

    @pl.when(k == 0)
    def _init():
        sum_acc[...] = jnp.zeros_like(sum_acc)
        max_acc[...] = jnp.full_like(max_acc, -jnp.inf)

    xb = x_ref[...]                                    # (row_tile, hw_tile)
    if need_mask:
        # Padded columns were zero-filled in the wrapper: neutral for the sum,
        # but must be excluded from the max. (Static flag: no cost when H*W is
        # already a multiple of the tile width.)
        col = k * hw_tile + lax.broadcasted_iota(jnp.int32, xb.shape, 1)
        xb_max = jnp.where(col < hw, xb, jnp.array(-jnp.inf, dtype=xb.dtype))
    else:
        xb_max = xb

    # Elementwise accumulate (stays on the VPU); cross-lane reduce deferred.
    sum_acc[...] += xb.astype(jnp.float32)
    max_acc[...] = jnp.maximum(max_acc[...], xb_max)

    @pl.when(k == pl.num_programs(1) - 1)
    def _finalize():
        avg = jnp.sum(sum_acc[...], axis=-1, keepdims=True) * inv_hw
        mx = jnp.max(max_acc[...], axis=-1, keepdims=True)
        avg_ref[...] = avg.astype(avg_ref.dtype)
        max_ref[...] = mx.astype(max_ref.dtype)


def adaptive_max_avg_pool(x):
    """x: (N, C, H, W) float -> (N, 2*C): [per-channel mean | per-channel max]."""
    n, c, h, w = x.shape
    r = n * c
    hw = h * w

    x2 = x.reshape(r, hw)                  # lane-dense view; free in HBM

    # Tile choice: lane dim a multiple of 128 (target 512), rows a multiple of 8.
    # Per-step VMEM stays well under 4 MiB -> safe on v5e/v6e/v7x defaults.
    hw_tile = min(_round_up(hw, 128), 512)
    hw_padded = _round_up(hw, hw_tile)
    row_tile = min(_round_up(r, 8), 256)
    r_padded = _round_up(r, row_tile)

    if (r_padded != r) or (hw_padded != hw):
        x2 = jnp.pad(x2, ((0, r_padded - r), (0, hw_padded - hw)))

    grid = (r_padded // row_tile, hw_padded // hw_tile)

    kernel = functools.partial(
        _pool_kernel,
        hw=hw, hw_tile=hw_tile, inv_hw=float(1.0 / hw),
        need_mask=(hw_padded != hw))

    avg2, max2 = pl.pallas_call(
        kernel,
        out_shape=(jax.ShapeDtypeStruct((r_padded, 1), x.dtype),
                   jax.ShapeDtypeStruct((r_padded, 1), x.dtype)),
        grid_spec=pltpu.PrefetchScalarGridSpec(
            num_scalar_prefetch=0,
            grid=grid,
            in_specs=[pl.BlockSpec((row_tile, hw_tile), lambda i, k: (i, k))],
            out_specs=[pl.BlockSpec((row_tile, 1), lambda i, k: (i, 0)),
                       pl.BlockSpec((row_tile, 1), lambda i, k: (i, 0))],
            scratch_shapes=[pltpu.VMEM((row_tile, hw_tile), jnp.float32),
                            pltpu.VMEM((row_tile, hw_tile), x.dtype)]),
        compiler_params=pltpu.CompilerParams(
            dimension_semantics=("parallel", "arbitrary")),
    )(x2)

    avg = avg2[:r, 0].reshape(n, c)
    mx = max2[:r, 0].reshape(n, c)
    # Cheap XLA-level concat in the wrapper (output bytes are negligible).
    return jnp.concatenate([avg, mx], axis=1)


if __name__ == "__main__":
    key = jax.random.PRNGKey(0)
    N, C, H, W = 2, 4, 16, 16
    x = jax.random.normal(key, (N, C, H, W), dtype=jnp.float32)

    out = adaptive_max_avg_pool(x)
    out = jax.block_until_ready(out)

    # Reference check (plain JAX) against AdaptiveAvg/MaxPool2d(1) + cat semantics.
    ref = jnp.concatenate(
        [jnp.mean(x, axis=(2, 3)), jnp.max(x, axis=(2, 3))], axis=1)
    np.testing.assert_allclose(np.asarray(out), np.asarray(ref),
                               rtol=1e-5, atol=1e-5)
    assert out.shape == (N, 2 * C)

    print("KERNEL_OK")
</pallas_src>

<mosaic_0001>
module attributes {stable_mosaic.version = 11 : i64} {
  func.func @_pool_kernel(%arg0: i32, %arg1: i32, %arg2: memref<8x256xf32, #tpu.memory_space<vmem>>, %arg3: memref<8x1xf32, #tpu.memory_space<vmem>>, %arg4: memref<8x1xf32, #tpu.memory_space<vmem>>, %arg5: memref<8x256xf32, #tpu.memory_space<vmem>>, %arg6: memref<8x256xf32, #tpu.memory_space<vmem>>) attributes {dimension_semantics = [#tpu.dimension_semantics<parallel>, #tpu.dimension_semantics<arbitrary>], iteration_bounds = array<i64: 1, 1>, scalar_prefetch = 0 : i64, scratch_operands = 2 : i64, tpu.core_type = #tpu.core_type<tc>, window_params = [{transform_indices = @transform_0, window_bounds = array<i64: 8, 256>}, {transform_indices = @transform_1, window_bounds = array<i64: 8, 1>}, {transform_indices = @transform_2, window_bounds = array<i64: 8, 1>}]} {
    %c0_i32 = arith.constant 0 : i32
    %0 = arith.cmpi eq, %arg1, %c0_i32 : i32
    %1 = arith.extui %0 : i1 to i32
    %c0_i32_0 = arith.constant 0 : i32
    %2 = arith.cmpi ne, %1, %c0_i32_0 : i32
    scf.if %2 {
      %cst = arith.constant 0.000000e+00 : f32
      %13 = vector.broadcast %cst : f32 to vector<8x256xf32>
      %c0_12 = arith.constant 0 : index
      %c0_13 = arith.constant 0 : index
      %14 = vector.load %arg5[%c0_12, %c0_13] : memref<8x256xf32, #tpu.memory_space<vmem>>, vector<8x256xf32>
      tpu.vector_store %arg5[%c0_12, %c0_13], %13 {strides = array<i32>} : memref<8x256xf32, #tpu.memory_space<vmem>>, vector<8x256xf32>,
      %cst_14 = arith.constant 0xFF800000 : f32
      %15 = vector.broadcast %cst_14 : f32 to vector<8x256xf32>
      %c0_15 = arith.constant 0 : index
      %c0_16 = arith.constant 0 : index
      %16 = vector.load %arg6[%c0_15, %c0_16] : memref<8x256xf32, #tpu.memory_space<vmem>>, vector<8x256xf32>
      tpu.vector_store %arg6[%c0_15, %c0_16], %15 {strides = array<i32>} : memref<8x256xf32, #tpu.memory_space<vmem>>, vector<8x256xf32>,
    } else {
    }
    %c0 = arith.constant 0 : index
    %c0_1 = arith.constant 0 : index
    %3 = vector.load %arg2[%c0, %c0_1] : memref<8x256xf32, #tpu.memory_space<vmem>>, vector<8x256xf32>
    %c0_2 = arith.constant 0 : index
    %c0_3 = arith.constant 0 : index
    %4 = vector.load %arg5[%c0_2, %c0_3] : memref<8x256xf32, #tpu.memory_space<vmem>>, vector<8x256xf32>
    %5 = arith.addf %4, %3 : vector<8x256xf32>
    %c0_4 = arith.constant 0 : index
    %c0_5 = arith.constant 0 : index
    %6 = vector.load %arg5[%c0_4, %c0_5] : memref<8x256xf32, #tpu.memory_space<vmem>>, vector<8x256xf32>
    tpu.vector_store %arg5[%c0_4, %c0_5], %5 {strides = array<i32>} : memref<8x256xf32, #tpu.memory_space<vmem>>, vector<8x256xf32>,
    %c0_6 = arith.constant 0 : index
    %c0_7 = arith.constant 0 : index
    %7 = vector.load %arg6[%c0_6, %c0_7] : memref<8x256xf32, #tpu.memory_space<vmem>>, vector<8x256xf32>
    %8 = arith.maximumf %7, %3 : vector<8x256xf32>
    %c0_8 = arith.constant 0 : index
    %c0_9 = arith.constant 0 : index
    %9 = vector.load %arg6[%c0_8, %c0_9] : memref<8x256xf32, #tpu.memory_space<vmem>>, vector<8x256xf32>
    tpu.vector_store %arg6[%c0_8, %c0_9], %8 {strides = array<i32>} : memref<8x256xf32, #tpu.memory_space<vmem>>, vector<8x256xf32>,
    %c0_i32_10 = arith.constant 0 : i32
    %10 = arith.cmpi eq, %arg1, %c0_i32_10 : i32
    %11 = arith.extui %10 : i1 to i32
    %c0_i32_11 = arith.constant 0 : i32
    %12 = arith.cmpi ne, %11, %c0_i32_11 : i32
    scf.if %12 {
      %c0_12 = arith.constant 0 : index
      %c0_13 = arith.constant 0 : index
      %13 = vector.load %arg5[%c0_12, %c0_13] : memref<8x256xf32, #tpu.memory_space<vmem>>, vector<8x256xf32>
      %cst = arith.constant dense<0.000000e+00> : vector<8xf32>
      %14 = vector.multi_reduction <add>, %13, %cst [1] : vector<8x256xf32> to vector<8xf32>
      %15 = vector.shape_cast %14 : vector<8xf32> to vector<8x1xf32>
      %cst_14 = arith.constant 3.906250e-03 : f32
      %16 = vector.broadcast %cst_14 : f32 to vector<8x1xf32>
      %17 = arith.mulf %15, %16 : vector<8x1xf32>
      %c0_15 = arith.constant 0 : index
      %c0_16 = arith.constant 0 : index
      %18 = vector.load %arg6[%c0_15, %c0_16] : memref<8x256xf32, #tpu.memory_space<vmem>>, vector<8x256xf32>
      %cst_17 = arith.constant dense<0xFF800000> : vector<8xf32>
      %19 = vector.multi_reduction <maximumf>, %18, %cst_17 [1] : vector<8x256xf32> to vector<8xf32>
      %20 = vector.shape_cast %19 : vector<8xf32> to vector<8x1xf32>
      %c0_18 = arith.constant 0 : index
      %c0_19 = arith.constant 0 : index
      %21 = vector.load %arg3[%c0_18, %c0_19] : memref<8x1xf32, #tpu.memory_space<vmem>>, vector<8x1xf32>
      tpu.vector_store %arg3[%c0_18, %c0_19], %17 {strides = array<i32>} : memref<8x1xf32, #tpu.memory_space<vmem>>, vector<8x1xf32>,
      %c0_20 = arith.constant 0 : index
      %c0_21 = arith.constant 0 : index
      %22 = vector.load %arg4[%c0_20, %c0_21] : memref<8x1xf32, #tpu.memory_space<vmem>>, vector<8x1xf32>
      tpu.vector_store %arg4[%c0_20, %c0_21], %20 {strides = array<i32>} : memref<8x1xf32, #tpu.memory_space<vmem>>, vector<8x1xf32>,
    } else {
    }
    return
  }
  func.func @transform_0(%arg0: i32, %arg1: i32) -> (i32, i32) {
    %c0_i32 = arith.constant 0 : i32
    return %arg0, %arg1 : i32, i32
  }
  func.func @transform_1(%arg0: i32, %arg1: i32) -> (i32, i32) {
    %c0_i32 = arith.constant 0 : i32
    %c0_i32_0 = arith.constant 0 : i32
    return %arg0, %c0_i32 : i32, i32
  }
  func.func @transform_2(%arg0: i32, %arg1: i32) -> (i32, i32) {
    %c0_i32 = arith.constant 0 : i32
    %c0_i32_0 = arith.constant 0 : i32
    return %arg0, %c0_i32 : i32, i32
  }
}

</mosaic_0001>

<llo_original>
// kernel: tpu_custom_call.1
$region0: #{tpu_custom_call.1}
  #allocation0 [shape = 'u32[]', space=smem, size = 0x4, offset = 0x4, fixed_abs, tag = 'smem constant byte address 0x4 - core index']
  #allocation1 [shape = 'u32[72,128]{1,0:T(1,128)}', space=vmem, size = 0x9000, scoped, tag = 'internal scratch']
  #allocation2 [shape = 'f32[8,256]{1,0:T(8,128)}', space=vmem, size = 0x2000, scoped, tag = 'scratch operand']
  #allocation3 [shape = 'f32[8,256]{1,0:T(8,128)}', space=vmem, size = 0x2000, scoped, tag = 'scratch operand']
  %s0 = inlined_call_operand.hbm [shape: f32[8,256], index: 0, kind: input, shape index: {}]
  %s1 = inlined_call_operand.vmem [shape: f32[8,1], index: 1, kind: output, shape index: {0}]
  %s2 = inlined_call_operand.vmem [shape: f32[8,1], index: 2, kind: output, shape index: {1}]
  %3 = xla_tuple %s1, %s2
  %s4 = sld [smem:[#allocation0]]
  $region34: #{tpu_custom_call.1} parent=0
    _
  %s6 = ssub.s32 1, %s4
  %s7 = scalar_select 0, %s6, %s4
  $region1: #{tpu_custom_call.1} parent=0
    #allocation4 [shape = 'u8[8192]{0}', space=vmem, size = 0x2000, scoped, tag = 'input window, operand 0, single buffered']
    #allocation5 [shape = 's32[1]{0}', space=sflag, size = 0x4, scoped, tag = 'scoped memory for tpu_custom_call.1']
    %8 = vsyncpa [#allocation5], 0
    // Predicated region
    $region2: #{tpu_custom_call.1} parent=1 // pred_check
      _
    $region3: #{tpu_custom_call.1} parent=1 // pred_check_branch
      %10 = sbr.rel (0) target = $region5
    $region4: #{tpu_custom_call.1} parent=1 // pred_region
      %12 = vsyncadd [#allocation5], 0
      %s14 = sshll.u32 %s0, 4
      %s15 = int_to_ptr.hbm [resolvable:$true] %s14
      %s16 = sshll.u32 [#allocation4], 4
      %s17 = int_to_ptr.vmem [resolvable:$true] %s16
      %19 = dma.hbm_to_vmem [thread:$0]  %s15, 256, %s17, [#allocation5]
    $region5: #{tpu_custom_call.1} parent=1 // pred_fallthru
      _
    // Predicated region
    $region6: #{tpu_custom_call.1} parent=1 // pred_check
      _
    $region7: #{tpu_custom_call.1} parent=1 // pred_check_branch
      %21 = sbr.rel (0) target = $region9
    $region8: #{tpu_custom_call.1} parent=1 // pred_region
      %23 = dma.done [#allocation5], 256
    $region9: #{tpu_custom_call.1} parent=1 // pred_fallthru
      _
    %p24 = scmp.eq.s32.totalorder 0, 0
    // Predicated region
    $region10: #{tpu_custom_call.1} parent=1 // pred_check
      %p25 = pneg %p24
    $region11: #{tpu_custom_call.1} parent=1 // pred_check_branch
      %27 = sbr.rel (%p25) target = $region13
    $region12: #{tpu_custom_call.1} parent=1 // pred_region
      %28 = vst [vmem:[#allocation2] sm:$0xff] 0.0
      %29 = vst [vmem:[#allocation2 + $0x8] sm:$0xff] 0.0
      %30 = vst [vmem:[#allocation3] sm:$0xff] -inf
      %31 = vst [vmem:[#allocation3 + $0x8] sm:$0xff] -inf
    $region13: #{tpu_custom_call.1} parent=1 // pred_fallthru
      _
    %v32 = vld [vmem:[#allocation4] sm:$0xff]
    %v33 = vld [vmem:[#allocation4 + $0x8] sm:$0xff]
    %v34 = vld [vmem:[#allocation2] sm:$0xff]
    %v35 = vld [vmem:[#allocation2 + $0x8] sm:$0xff]
    %v36 = vadd.f32 %v34, %v32
    %v37 = vadd.f32 %v35, %v33
    %38 = vst [vmem:[#allocation2] sm:$0xff] %v36
    %39 = vst [vmem:[#allocation2 + $0x8] sm:$0xff] %v37
    %v40 = vld [vmem:[#allocation3] sm:$0xff]
    %v41 = vld [vmem:[#allocation3 + $0x8] sm:$0xff]
    %v42 = vmax.f32 %v40, %v32
    %v43 = vmax.f32 %v41, %v33
    %44 = vst [vmem:[#allocation3] sm:$0xff] %v42
    %45 = vst [vmem:[#allocation3 + $0x8] sm:$0xff] %v43
    // Predicated region
    $region14: #{tpu_custom_call.1} parent=1 // pred_check
      %p46 = pneg %p24
    $region15: #{tpu_custom_call.1} parent=1 // pred_check_branch
      %48 = sbr.rel (%p46) target = $region17
    $region16: #{tpu_custom_call.1} parent=1 // pred_region
      %v49 = vld [vmem:[#allocation2] sm:$0xff]
      %v50 = vld [vmem:[#allocation2 + $0x8] sm:$0xff]
      %v51 = vadd.f32 %v49, %v50
      %52 = vadd.xlane.f32.xlu0 %v51
      %v53 = vpop.xlane.xlu0 %52
      %v54 = vmul.f32 %v53, 0.00390625
      %v55 = vld [vmem:[#allocation3] sm:$0xff]
      %v56 = vld [vmem:[#allocation3 + $0x8] sm:$0xff]
      %v57 = vmax.f32 %v55, %v56
      %58 = vmax.xlane.f32.xlu0 %v57
      %v59 = vpop.xlane.xlu0 %58
      %vm60 = vcmask 7168
      %61 = vst.msk [vmem:[%s1] sm:$0xff] %vm60, %v54
      %62 = vst.msk [vmem:[%s2] sm:$0xff] %vm60, %v59
    $region17: #{tpu_custom_call.1} parent=1 // pred_fallthru
      _
    // Predicated region
    $region18: #{tpu_custom_call.1} parent=1 // pred_check
      _
    $region19: #{tpu_custom_call.1} parent=1 // pred_check_branch
      %64 = sbr.rel (0) target = $region21
    $region20: #{tpu_custom_call.1} parent=1 // pred_region
      _
    $region21: #{tpu_custom_call.1} parent=1 // pred_fallthru
      _
    // Predicated region
    $region22: #{tpu_custom_call.1} parent=1 // pred_check
      _
    $region23: #{tpu_custom_call.1} parent=1 // pred_check_branch
      %66 = sbr.rel (0) target = $region25
    $region24: #{tpu_custom_call.1} parent=1 // pred_region
      _
    $region25: #{tpu_custom_call.1} parent=1 // pred_fallthru
      _
    // Predicated region
    $region26: #{tpu_custom_call.1} parent=1 // pred_check
      _
    $region27: #{tpu_custom_call.1} parent=1 // pred_check_branch
      %68 = sbr.rel (0) target = $region29
    $region28: #{tpu_custom_call.1} parent=1 // pred_region
      _
    $region29: #{tpu_custom_call.1} parent=1 // pred_fallthru
      _
    // Predicated region
    $region30: #{tpu_custom_call.1} parent=1 // pred_check
      _
    $region31: #{tpu_custom_call.1} parent=1 // pred_check_branch
      %70 = sbr.rel (0) target = $region33
    $region32: #{tpu_custom_call.1} parent=1 // pred_region
      _
    $region33: #{tpu_custom_call.1} parent=1 // pred_fallthru
      _
    %71 = vsyncpa [#allocation5], 1

</llo_original>
